<compile_context>
chip_gen: v7x
topology: tpu7x:2x2x1
jax: 0.10.0
libtpu: 0.0.40
codegen_flags: <defaults>
</compile_context>

<pallas_src>
import jax
import jax.numpy as jnp
from jax.experimental import pallas as pl
from jax.experimental.pallas import tpu as pltpu


def _round_up(x: int, m: int) -> int:
    return ((x + m - 1) // m) * m


# ----------------------------- Pallas kernels ------------------------------ #
def _hidden_head_kernel(a_ref, x_ref, w1_ref, b1_ref, wh_ref, hw_ref):
    """Per row tile:  hw = relu((A_tile @ X) @ W1 + b1) @ [W_mu | W_ls].

    (A@X)@W1 order is kept only for its small (TN, F) intermediate (VMEM /
    vreg pressure) — both association orders cost the same MXU column-tile
    passes, so this is not a FLOP optimization.
    """
    ax = jnp.dot(a_ref[...], x_ref[...],
                 preferred_element_type=jnp.float32)          # (TN, F) f32
    h = jnp.dot(ax, w1_ref[...],
                preferred_element_type=jnp.float32) + b1_ref[...]
    h = jnp.maximum(h, 0.0)                                   # (TN, HP)
    # TODO(synk): F.dropout(p=0.5) is identity in eval mode; training-mode
    # dropout (pltpu.prng_random_bits mask) not implemented here.
    hw_ref[...] = jnp.dot(h, wh_ref[...],
                          preferred_element_type=jnp.float32
                          ).astype(hw_ref.dtype)              # (TN, OP)


def _aggregate_kernel(a_ref, hw_ref, bh_ref, o_ref):
    """Per row tile:  out = A_tile @ hw + [b_mu | b_ls]."""
    a = a_ref[...].astype(jnp.float32)                        # bf16 -> f32
    out = jnp.dot(a, hw_ref[...],
                  preferred_element_type=jnp.float32) + bh_ref[...]
    o_ref[...] = out.astype(o_ref.dtype)


# --------------------------- pallas_call wrappers --------------------------- #
def _vmem_limit(block_bytes: int) -> int:
    # double-buffered blocks + 1 MiB headroom, clamped to a portable range
    # (v5e scoped default 16 MiB, v6e/v7x 32 MiB; v7x physical 64 MiB).
    need = 2 * block_bytes + (1 << 20)
    return int(min(max(need, 4 << 20), 48 << 20))


def _encoder_pallas(a_bf16, x_bf16, w1_p, b1_p, wh_p, bh_p, tn):
    np_, f_in = x_bf16.shape
    hp = w1_p.shape[1]          # padded hidden width   (multiple of 128)
    op = wh_p.shape[1]          # padded head out width (multiple of 128)
    n_tiles = np_ // tn

    # ---- call 1: per-row-tile  hw = relu(A X W1 + b1) @ [W_mu|W_ls] -------
    blk1_bytes = (tn * np_ * 2 + np_ * f_in * 2 + f_in * hp * 4 + hp * 4
                  + hp * op * 4 + tn * op * 4)
    hw = pl.pallas_call(
        _hidden_head_kernel,
        out_shape=jax.ShapeDtypeStruct((np_, op), jnp.float32),
        grid=(n_tiles,),
        in_specs=[
            pl.BlockSpec((tn, np_), lambda i: (i, 0)),     # A_hat row tile (bf16)
            pl.BlockSpec((np_, f_in), lambda i: (0, 0)),   # X (resident, bf16)
            pl.BlockSpec((f_in, hp), lambda i: (0, 0)),    # W1 (resident)
            pl.BlockSpec((1, hp), lambda i: (0, 0)),       # b1 (resident)
            pl.BlockSpec((hp, op), lambda i: (0, 0)),      # W_mu|W_ls (resident)
        ],
        out_specs=pl.BlockSpec((tn, op), lambda i: (i, 0)),
        compiler_params=pltpu.CompilerParams(
            dimension_semantics=("parallel",),
            vmem_limit_bytes=_vmem_limit(blk1_bytes)),
        cost_estimate=pl.CostEstimate(
            flops=int(2 * (np_ * np_ * f_in + np_ * f_in * hp
                           + np_ * hp * op)),
            transcendentals=0,
            bytes_accessed=int(np_ * np_ * 2 + np_ * f_in * 2 + f_in * hp * 4
                               + hp * 4 + hp * op * 4 + np_ * op * 4)),
    )(a_bf16, x_bf16, w1_p, b1_p, wh_p)

    # ---- call 2: per-row-tile  out = A @ hw + [b_mu|b_ls] ------------------
    blk2_bytes = tn * np_ * 2 + np_ * op * 4 + op * 4 + tn * op * 4
    out = pl.pallas_call(
        _aggregate_kernel,
        out_shape=jax.ShapeDtypeStruct((np_, op), jnp.float32),
        grid=(n_tiles,),
        in_specs=[
            pl.BlockSpec((tn, np_), lambda i: (i, 0)),     # A_hat row tile (bf16)
            pl.BlockSpec((np_, op), lambda i: (0, 0)),     # hw (resident, f32)
            pl.BlockSpec((1, op), lambda i: (0, 0)),       # b_mu|b_ls (resident)
        ],
        out_specs=pl.BlockSpec((tn, op), lambda i: (i, 0)),
        compiler_params=pltpu.CompilerParams(
            dimension_semantics=("parallel",),
            vmem_limit_bytes=_vmem_limit(blk2_bytes)),
        cost_estimate=pl.CostEstimate(
            flops=int(2 * np_ * np_ * op),
            transcendentals=0,
            bytes_accessed=int(np_ * np_ * 2 + np_ * op * 4 + op * 4
                               + np_ * op * 4)),
    )(a_bf16, hw, bh_p)
    return out


# ------------------------------ JAX glue ---------------------------------- #
def normalized_adjacency(edge_index, num_nodes):
    """D^-1/2 (A + I) D^-1/2, matching torch_geometric GCNConv defaults.

    NOTE: .at[dst, src].set(1.0) deduplicates repeated edges; the test graph
    below has no duplicate edges or pre-existing self-loops, so this matches
    GCNConv exactly.
    """
    src = edge_index[0]
    dst = edge_index[1]
    a = jnp.zeros((num_nodes, num_nodes), jnp.float32)
    a = a.at[dst, src].set(1.0)                     # message flows src -> dst
    a = a + jnp.eye(num_nodes, dtype=jnp.float32)   # add self-loops
    deg = jnp.sum(a, axis=1)
    dinv = jnp.where(deg > 0, 1.0 / jnp.sqrt(deg), 0.0)
    return dinv[:, None] * a * dinv[None, :]


def _pad_last(a, target):
    pad = target - a.shape[-1]
    return a if pad <= 0 else jnp.pad(a, [(0, 0)] * (a.ndim - 1) + [(0, pad)])


def _pad_first(a, target):
    pad = target - a.shape[0]
    return a if pad <= 0 else jnp.pad(a, [(0, pad)] + [(0, 0)] * (a.ndim - 1))


@jax.jit
def variational_gcn_encoder(x, edge_index, params):
    """Forward pass equivalent of VariationalGCNEncoder.forward (eval mode)."""
    n, _ = x.shape
    hidden = params["w1"].shape[1]
    out_ch = params["w_mu"].shape[1]

    a_norm = normalized_adjacency(edge_index, n)

    # MXU-matched row tile; pad node count so A tiles / output rows are
    # unmasked and the grid divides evenly (all padding is zeros -> results on
    # the unpadded slice are unchanged).
    tn = min(256, _round_up(n, 128))
    np_ = _round_up(n, tn)

    hp = _round_up(hidden, 128)
    op = _round_up(2 * out_ch, 128)

    a_p = _pad_last(_pad_first(a_norm, np_), np_).astype(jnp.bfloat16)
    x_p = _pad_first(x, np_).astype(jnp.bfloat16)

    w1_p = _pad_last(params["w1"], hp)
    b1_p = _pad_last(params["b1"], hp)
    w_head = jnp.concatenate([params["w_mu"], params["w_ls"]], axis=1)
    b_head = jnp.concatenate([params["b_mu"], params["b_ls"]], axis=1)
    wh_p = _pad_last(_pad_first(w_head, hp), op)
    bh_p = _pad_last(b_head, op)

    out = _encoder_pallas(a_p, x_p, w1_p, b1_p, wh_p, bh_p, tn)
    mu = out[:n, :out_ch]
    logstd = out[:n, out_ch:2 * out_ch]
    return mu, logstd


def init_params(key, num_features, out_channels):
    """Deterministic glorot-style weights, zero biases (GCNConv defaults)."""
    hidden = 2 * out_channels
    k1, k2, k3 = jax.random.split(key, 3)

    def glorot(k, fan_in, fan_out):
        limit = jnp.sqrt(6.0 / (fan_in + fan_out))
        return jax.random.uniform(
            k, (fan_in, fan_out), jnp.float32, minval=-limit, maxval=limit)

    return {
        "w1": glorot(k1, num_features, hidden),
        "b1": jnp.zeros((1, hidden), jnp.float32),
        "w_mu": glorot(k2, hidden, out_channels),
        "b_mu": jnp.zeros((1, out_channels), jnp.float32),
        "w_ls": glorot(k3, hidden, out_channels),
        "b_ls": jnp.zeros((1, out_channels), jnp.float32),
    }


def _reference_encoder(x, edge_index, params, quantize_inputs=True):
    """Pure-JAX reference for validation.

    With quantize_inputs=True, A_hat and X go through the same bf16 cast as
    the kernel inputs (f32 accumulation everywhere), so the comparison against
    the kernel is tight; the remaining difference vs. a full-f32 reference is
    bounded by bf16 input quantization (~0.4% relative).
    """
    a = normalized_adjacency(edge_index, x.shape[0])
    if quantize_inputs:
        a = a.astype(jnp.bfloat16).astype(jnp.float32)
        x = x.astype(jnp.bfloat16).astype(jnp.float32)
    h = jnp.maximum(a @ (x @ params["w1"]) + params["b1"], 0.0)
    mu = a @ (h @ params["w_mu"]) + params["b_mu"]
    ls = a @ (h @ params["w_ls"]) + params["b_ls"]
    return mu, ls


# --------------------------------- main ------------------------------------ #
if __name__ == "__main__":
    key = jax.random.PRNGKey(0)
    k_x, k_p = jax.random.split(key)

    N = 32             # number of graph nodes
    NUM_FEATURES = 16  # dataset.num_features
    OUT_CHANNELS = 32  # out_channels (hidden = 64)

    # Node features.
    x = jax.random.normal(k_x, (N, NUM_FEATURES), jnp.float32)

    # Deterministic undirected ring graph: edge_index of shape (2, 2N).
    idx = jnp.arange(N, dtype=jnp.int32)
    fwd = jnp.stack([idx, (idx + 1) % N])
    bwd = jnp.stack([(idx + 1) % N, idx])
    edge_index = jnp.concatenate([fwd, bwd], axis=1)

    params = init_params(k_p, NUM_FEATURES, OUT_CHANNELS)

    mu, logstd = variational_gcn_encoder(x, edge_index, params)
    jax.block_until_ready((mu, logstd))

    assert mu.shape == (N, OUT_CHANNELS)
    assert logstd.shape == (N, OUT_CHANNELS)

    # Tight check against a reference that sees the same bf16-quantized A / X.
    mu_q, ls_q = _reference_encoder(x, edge_index, params, quantize_inputs=True)
    assert jnp.allclose(mu, mu_q, rtol=1e-3, atol=1e-3)
    assert jnp.allclose(logstd, ls_q, rtol=1e-3, atol=1e-3)

    # Loose sanity check against the full-f32 reference (bf16 A/X inputs).
    mu_f, ls_f = _reference_encoder(x, edge_index, params, quantize_inputs=False)
    assert jnp.allclose(mu, mu_f, rtol=1e-1, atol=1e-1)
    assert jnp.allclose(logstd, ls_f, rtol=1e-1, atol=1e-1)

    print("KERNEL_OK")
</pallas_src>

<mosaic_0001>
module attributes {stable_mosaic.version = 11 : i64} {
  func.func @_hidden_head_kernel(%arg0: i32, %arg1: memref<128x128xbf16, #tpu.memory_space<vmem>>, %arg2: memref<128x16xbf16, #tpu.memory_space<vmem>>, %arg3: memref<16x128xf32, #tpu.memory_space<vmem>>, %arg4: memref<1x128xf32, #tpu.memory_space<vmem>>, %arg5: memref<128x128xf32, #tpu.memory_space<vmem>>, %arg6: memref<128x128xf32, #tpu.memory_space<vmem>>) attributes {dimension_semantics = [#tpu.dimension_semantics<parallel>], iteration_bounds = array<i64: 1>, scalar_prefetch = 0 : i64, scratch_operands = 0 : i64, tpu.core_type = #tpu.core_type<tc>, window_params = [{transform_indices = @transform_0, window_bounds = array<i64: 128, 128>}, {pipeline_mode = #tpu.pipeline_mode<synchronous>, transform_indices = @transform_1, window_bounds = array<i64: 128, 16>}, {pipeline_mode = #tpu.pipeline_mode<synchronous>, transform_indices = @transform_2, window_bounds = array<i64: 16, 128>}, {pipeline_mode = #tpu.pipeline_mode<synchronous>, transform_indices = @transform_3, window_bounds = array<i64: 1, 128>}, {pipeline_mode = #tpu.pipeline_mode<synchronous>, transform_indices = @transform_4, window_bounds = array<i64: 128, 128>}, {transform_indices = @transform_5, window_bounds = array<i64: 128, 128>}]} {
    %c0 = arith.constant 0 : index
    %c0_0 = arith.constant 0 : index
    %0 = vector.load %arg1[%c0, %c0_0] : memref<128x128xbf16, #tpu.memory_space<vmem>>, vector<128x128xbf16>
    %c0_1 = arith.constant 0 : index
    %c0_2 = arith.constant 0 : index
    %1 = vector.load %arg2[%c0_1, %c0_2] : memref<128x16xbf16, #tpu.memory_space<vmem>>, vector<128x16xbf16>
    %cst = arith.constant dense<0.000000e+00> : vector<128x16xf32>
    %2 = tpu.matmul %0, %1, %cst {dimension_numbers = #tpu.dot_dimension_numbers<[1], [0], [0], [1], [0, 0, 1, 1], [], []>} : vector<128x128xbf16>, vector<128x16xbf16>, vector<128x16xf32> -> vector<128x16xf32>
    %c0_3 = arith.constant 0 : index
    %c0_4 = arith.constant 0 : index
    %3 = vector.load %arg3[%c0_3, %c0_4] : memref<16x128xf32, #tpu.memory_space<vmem>>, vector<16x128xf32>
    %cst_5 = arith.constant dense<0.000000e+00> : vector<128x128xf32>
    %4 = tpu.matmul %2, %3, %cst_5 {dimension_numbers = #tpu.dot_dimension_numbers<[1], [0], [0], [1], [0, 0, 1, 1], [], []>} : vector<128x16xf32>, vector<16x128xf32>, vector<128x128xf32> -> vector<128x128xf32>
    %c0_6 = arith.constant 0 : index
    %c0_7 = arith.constant 0 : index
    %5 = vector.load %arg4[%c0_6, %c0_7] : memref<1x128xf32, #tpu.memory_space<vmem>>, vector<1x128xf32>
    %6 = vector.broadcast %5 : vector<1x128xf32> to vector<128x128xf32>
    %7 = arith.addf %4, %6 : vector<128x128xf32>
    %cst_8 = arith.constant 0.000000e+00 : f32
    %8 = vector.broadcast %cst_8 : f32 to vector<128x128xf32>
    %9 = arith.maximumf %7, %8 : vector<128x128xf32>
    %c0_9 = arith.constant 0 : index
    %c0_10 = arith.constant 0 : index
    %10 = vector.load %arg5[%c0_9, %c0_10] : memref<128x128xf32, #tpu.memory_space<vmem>>, vector<128x128xf32>
    %cst_11 = arith.constant dense<0.000000e+00> : vector<128x128xf32>
    %11 = tpu.matmul %9, %10, %cst_11 {dimension_numbers = #tpu.dot_dimension_numbers<[1], [0], [0], [1], [0, 0, 1, 1], [], []>} : vector<128x128xf32>, vector<128x128xf32>, vector<128x128xf32> -> vector<128x128xf32>
    %c0_12 = arith.constant 0 : index
    %c0_13 = arith.constant 0 : index
    %12 = vector.load %arg6[%c0_12, %c0_13] : memref<128x128xf32, #tpu.memory_space<vmem>>, vector<128x128xf32>
    tpu.vector_store %arg6[%c0_12, %c0_13], %11 {strides = array<i32>} : memref<128x128xf32, #tpu.memory_space<vmem>>, vector<128x128xf32>,
    return
  }
  func.func @transform_0(%arg0: i32) -> (i32, i32) {
    %c0_i32 = arith.constant 0 : i32
    %c0_i32_0 = arith.constant 0 : i32
    return %arg0, %c0_i32 : i32, i32
  }
  func.func @transform_1(%arg0: i32) -> (i32, i32) {
    %c0_i32 = arith.constant 0 : i32
    %c0_i32_0 = arith.constant 0 : i32
    %c0_i32_1 = arith.constant 0 : i32
    return %c0_i32, %c0_i32_0 : i32, i32
  }
  func.func @transform_2(%arg0: i32) -> (i32, i32) {
    %c0_i32 = arith.constant 0 : i32
    %c0_i32_0 = arith.constant 0 : i32
    %c0_i32_1 = arith.constant 0 : i32
    return %c0_i32, %c0_i32_0 : i32, i32
  }
  func.func @transform_3(%arg0: i32) -> (i32, i32) {
    %c0_i32 = arith.constant 0 : i32
    %c0_i32_0 = arith.constant 0 : i32
    %c0_i32_1 = arith.constant 0 : i32
    return %c0_i32, %c0_i32_0 : i32, i32
  }
  func.func @transform_4(%arg0: i32) -> (i32, i32) {
    %c0_i32 = arith.constant 0 : i32
    %c0_i32_0 = arith.constant 0 : i32
    %c0_i32_1 = arith.constant 0 : i32
    return %c0_i32, %c0_i32_0 : i32, i32
  }
  func.func @transform_5(%arg0: i32) -> (i32, i32) {
    %c0_i32 = arith.constant 0 : i32
    %c0_i32_0 = arith.constant 0 : i32
    return %arg0, %c0_i32 : i32, i32
  }
}

module attributes {stable_mosaic.version = 11 : i64} {
  func.func @_aggregate_kernel(%arg0: i32, %arg1: memref<128x128xbf16, #tpu.memory_space<vmem>>, %arg2: memref<128x128xf32, #tpu.memory_space<vmem>>, %arg3: memref<1x128xf32, #tpu.memory_space<vmem>>, %arg4: memref<128x128xf32, #tpu.memory_space<vmem>>) attributes {dimension_semantics = [#tpu.dimension_semantics<parallel>], iteration_bounds = array<i64: 1>, scalar_prefetch = 0 : i64, scratch_operands = 0 : i64, tpu.core_type = #tpu.core_type<tc>, window_params = [{transform_indices = @transform_0, window_bounds = array<i64: 128, 128>}, {pipeline_mode = #tpu.pipeline_mode<synchronous>, transform_indices = @transform_1, window_bounds = array<i64: 128, 128>}, {pipeline_mode = #tpu.pipeline_mode<synchronous>, transform_indices = @transform_2, window_bounds = array<i64: 1, 128>}, {transform_indices = @transform_3, window_bounds = array<i64: 128, 128>}]} {
    %c0 = arith.constant 0 : index
    %c0_0 = arith.constant 0 : index
    %0 = vector.load %arg1[%c0, %c0_0] : memref<128x128xbf16, #tpu.memory_space<vmem>>, vector<128x128xbf16>
    %1 = arith.extf %0 : vector<128x128xbf16> to vector<128x128xf32>
    %c0_1 = arith.constant 0 : index
    %c0_2 = arith.constant 0 : index
    %2 = vector.load %arg2[%c0_1, %c0_2] : memref<128x128xf32, #tpu.memory_space<vmem>>, vector<128x128xf32>
    %cst = arith.constant dense<0.000000e+00> : vector<128x128xf32>
    %3 = tpu.matmul %1, %2, %cst {dimension_numbers = #tpu.dot_dimension_numbers<[1], [0], [0], [1], [0, 0, 1, 1], [], []>} : vector<128x128xf32>, vector<128x128xf32>, vector<128x128xf32> -> vector<128x128xf32>
    %c0_3 = arith.constant 0 : index
    %c0_4 = arith.constant 0 : index
    %4 = vector.load %arg3[%c0_3, %c0_4] : memref<1x128xf32, #tpu.memory_space<vmem>>, vector<1x128xf32>
    %5 = vector.broadcast %4 : vector<1x128xf32> to vector<128x128xf32>
    %6 = arith.addf %3, %5 : vector<128x128xf32>
    %c0_5 = arith.constant 0 : index
    %c0_6 = arith.constant 0 : index
    %7 = vector.load %arg4[%c0_5, %c0_6] : memref<128x128xf32, #tpu.memory_space<vmem>>, vector<128x128xf32>
    tpu.vector_store %arg4[%c0_5, %c0_6], %6 {strides = array<i32>} : memref<128x128xf32, #tpu.memory_space<vmem>>, vector<128x128xf32>,
    return
  }
  func.func @transform_0(%arg0: i32) -> (i32, i32) {
    %c0_i32 = arith.constant 0 : i32
    %c0_i32_0 = arith.constant 0 : i32
    return %arg0, %c0_i32 : i32, i32
  }
  func.func @transform_1(%arg0: i32) -> (i32, i32) {
    %c0_i32 = arith.constant 0 : i32
    %c0_i32_0 = arith.constant 0 : i32
    %c0_i32_1 = arith.constant 0 : i32
    return %c0_i32, %c0_i32_0 : i32, i32
  }
  func.func @transform_2(%arg0: i32) -> (i32, i32) {
    %c0_i32 = arith.constant 0 : i32
    %c0_i32_0 = arith.constant 0 : i32
    %c0_i32_1 = arith.constant 0 : i32
    return %c0_i32, %c0_i32_0 : i32, i32
  }
  func.func @transform_3(%arg0: i32) -> (i32, i32) {
    %c0_i32 = arith.constant 0 : i32
    %c0_i32_0 = arith.constant 0 : i32
    return %arg0, %c0_i32 : i32, i32
  }
}

</mosaic_0001>

<llo_original>
// kernel: variational_gcn_encoder.3
$region0: #{variational_gcn_encoder.3}
  #allocation0 [shape = 'u32[]', space=smem, size = 0x4, offset = 0x4, fixed_abs, tag = 'smem constant byte address 0x4 - core index']
  #allocation1 [shape = 'u32[144,128]{1,0:T(1,128)}', space=vmem, size = 0x12000, scoped, tag = 'internal scratch']
  %s0 = inlined_call_operand.vmem [shape: bf16[128,128], index: 0, kind: input, shape index: {}]
  %s1 = inlined_call_operand.vmem [shape: f32[128,128], index: 1, kind: input, shape index: {}]
  %s2 = inlined_call_operand.vmem [shape: f32[1,128], index: 2, kind: input, shape index: {}]
  %s3 = inlined_call_operand.vmem [shape: f32[128,128], index: 3, kind: output, shape index: {}]
  %s4 = sld [smem:[#allocation0]]
  $region22: #{variational_gcn_encoder.3} parent=0
    _
  %s6 = ssub.s32 1, %s4
  %s7 = scalar_select 0, %s6, %s4
  // Predicated region
  $region2: #{variational_gcn_encoder.3} parent=0 // pred_check
    _
  $region3: #{variational_gcn_encoder.3} parent=0 // pred_check_branch
    %9 = sbr.rel (0) target = $region5
  $region4: #{variational_gcn_encoder.3} parent=0 // pred_region
    _
  $region5: #{variational_gcn_encoder.3} parent=0 // pred_fallthru
    _
  // Predicated region
  $region6: #{variational_gcn_encoder.3} parent=0 // pred_check
    _
  $region7: #{variational_gcn_encoder.3} parent=0 // pred_check_branch
    %11 = sbr.rel (0) target = $region9
  $region8: #{variational_gcn_encoder.3} parent=0 // pred_region
    _
  $region9: #{variational_gcn_encoder.3} parent=0 // pred_fallthru
    _
  // Predicated region
  $region10: #{variational_gcn_encoder.3} parent=0 // pred_check
    _
  $region11: #{variational_gcn_encoder.3} parent=0 // pred_check_branch
    %13 = sbr.rel (0) target = $region13
  $region12: #{variational_gcn_encoder.3} parent=0 // pred_region
    _
  $region13: #{variational_gcn_encoder.3} parent=0 // pred_fallthru
    _
  %v14 = vld [vmem:[%s0] sm:$0xf]
  %v15 = vld [vmem:[%s0 + $0x4] sm:$0xf]
  %v16 = vld [vmem:[%s0 + $0x8] sm:$0xf]
  %v17 = vld [vmem:[%s0 + $0xc] sm:$0xf]
  %v18 = vld [vmem:[%s0 + $0x10] sm:$0xf]
  %v19 = vld [vmem:[%s0 + $0x14] sm:$0xf]
  %v20 = vld [vmem:[%s0 + $0x18] sm:$0xf]
  %v21 = vld [vmem:[%s0 + $0x1c] sm:$0xf]
  %v22 = vld [vmem:[%s0 + $0x20] sm:$0xf]
  %v23 = vld [vmem:[%s0 + $0x24] sm:$0xf]
  %v24 = vld [vmem:[%s0 + $0x28] sm:$0xf]
  %v25 = vld [vmem:[%s0 + $0x2c] sm:$0xf]
  %v26 = vld [vmem:[%s0 + $0x30] sm:$0xf]
  %v27 = vld [vmem:[%s0 + $0x34] sm:$0xf]
  %v28 = vld [vmem:[%s0 + $0x38] sm:$0xf]
  %v29 = vld [vmem:[%s0 + $0x3c] sm:$0xf]
  %v30 = vunpack.c.l.bf16 %v14
  %v31 = vunpack.c.l.bf16 %v15
  %v32 = vunpack.c.l.bf16 %v16
  %v33 = vunpack.c.l.bf16 %v17
  %v34 = vunpack.c.l.bf16 %v18
  %v35 = vunpack.c.l.bf16 %v19
  %v36 = vunpack.c.l.bf16 %v20
  %v37 = vunpack.c.l.bf16 %v21
  %v38 = vunpack.c.l.bf16 %v22
  %v39 = vunpack.c.l.bf16 %v23
  %v40 = vunpack.c.l.bf16 %v24
  %v41 = vunpack.c.l.bf16 %v25
  %v42 = vunpack.c.l.bf16 %v26
  %v43 = vunpack.c.l.bf16 %v27
  %v44 = vunpack.c.l.bf16 %v28
  %v45 = vunpack.c.l.bf16 %v29
  %v46 = vld [vmem:[%s1] sm:$0xff]
  %v47 = vld [vmem:[%s1 + $0x8] sm:$0xff]
  %v48 = vld [vmem:[%s1 + $0x10] sm:$0xff]
  %v49 = vld [vmem:[%s1 + $0x18] sm:$0xff]
  %v50 = vld [vmem:[%s1 + $0x20] sm:$0xff]
  %v51 = vld [vmem:[%s1 + $0x28] sm:$0xff]
  %v52 = vld [vmem:[%s1 + $0x30] sm:$0xff]
  %v53 = vld [vmem:[%s1 + $0x38] sm:$0xff]
  %v54 = vld [vmem:[%s1 + $0x40] sm:$0xff]
  %v55 = vld [vmem:[%s1 + $0x48] sm:$0xff]
  %v56 = vld [vmem:[%s1 + $0x50] sm:$0xff]
  %v57 = vld [vmem:[%s1 + $0x58] sm:$0xff]
  %v58 = vld [vmem:[%s1 + $0x60] sm:$0xff]
  %v59 = vld [vmem:[%s1 + $0x68] sm:$0xff]
  %v60 = vld [vmem:[%s1 + $0x70] sm:$0xff]
  %v61 = vld [vmem:[%s1 + $0x78] sm:$0xff]
  %v62 = vld [vmem:[%s2] sm:$0x1]
  %v64 = vlaneseq
  %v65 = vshrl.u32 %v64, 7
  %v66 = vsub.s32 0, %v65
  %v67 = vrot.slane %v62, %v66
  %69 = vmatprep.subr.mxu0 0.0
  %70 = vmatpush1.msra.mxu0 %v46
  %71 = vmatprep.subr.mxu0 0.0
  %72 = vmatpush1.msra.mxu0 %v47
  %73 = vmatprep.subr.mxu0 0.0
  %74 = vmatpush1.msra.mxu0 %v48
  %75 = vmatprep.subr.mxu0 0.0
  %76 = vmatpush1.msra.mxu0 %v49
  %77 = vmatprep.subr.mxu0 0.0
  %78 = vmatpush1.msra.mxu0 %v50
  %79 = vmatprep.subr.mxu0 0.0
  %80 = vmatpush1.msra.mxu0 %v51
  %81 = vmatprep.subr.mxu0 0.0
  %82 = vmatpush1.msra.mxu0 %v52
  %83 = vmatprep.subr.mxu0 0.0
  %84 = vmatpush1.msra.mxu0 %v53
  %85 = vmatprep.subr.mxu0 0.0
  %86 = vmatpush1.msra.mxu0 %v54
  %87 = vmatprep.subr.mxu0 0.0
  %88 = vmatpush1.msra.mxu0 %v55
  %89 = vmatprep.subr.mxu0 0.0
  %90 = vmatpush1.msra.mxu0 %v56
  %91 = vmatprep.subr.mxu0 0.0
  %92 = vmatpush1.msra.mxu0 %v57
  %93 = vmatprep.subr.mxu0 0.0
  %94 = vmatpush1.msra.mxu0 %v58
  %95 = vmatprep.subr.mxu0 0.0
  %96 = vmatpush1.msra.mxu0 %v59
  %97 = vmatprep.subr.mxu0 0.0
  %98 = vmatpush1.msra.mxu0 %v60
  %99 = vmatprep.subr.mxu0 0.0
  %100 = vmatpush1.msra.mxu0 %v61
  %101 = vmatprep.subr.mxu0 0.0
  %102 = vmatpush1.msra.mxu0 0.0
  %103 = vmatprep.subr.mxu0 0.0
  %104 = vmatpush1.msra.mxu0 0.0
  %105 = vmatprep.subr.mxu0 0.0
  %106 = vmatpush1.msra.mxu0 0.0
  %107 = vmatprep.subr.mxu0 0.0
  %108 = vmatpush1.msra.mxu0 0.0
  %109 = vmatprep.subr.mxu0 0.0
  %110 = vmatpush1.msra.mxu0 0.0
  %111 = vmatprep.subr.mxu0 0.0
  %112 = vmatpush1.msra.mxu0 0.0
  %113 = vmatprep.subr.mxu0 0.0
  %114 = vmatpush1.msra.mxu0 0.0
  %115 = vmatprep.subr.mxu0 0.0
  %116 = vmatpush1.msra.mxu0 0.0
  %117 = vmatprep.subr.mxu0 0.0
  %118 = vmatpush1.msra.mxu0 0.0
  %119 = vmatprep.subr.mxu0 0.0
  %120 = vmatpush1.msra.mxu0 0.0
  %121 = vmatprep.subr.mxu0 0.0
  %122 = vmatpush1.msra.mxu0 0.0
  %123 = vmatprep.subr.mxu0 0.0
  %124 = vmatpush1.msra.mxu0 0.0
  %125 = vmatprep.subr.mxu0 0.0
  %126 = vmatpush1.msra.mxu0 0.0
  %127 = vmatprep.subr.mxu0 0.0
  %128 = vmatpush1.msra.mxu0 0.0
  %129 = vmatprep.subr.mxu0 0.0
  %130 = vmatpush1.msra.mxu0 0.0
  %131 = vmatprep.subr.mxu0 0.0
  %132 = vmatpush1.msra.mxu0 0.0
  %133 = vmatprep.mubr.f32.mxu0 0.0
  %134 = vmatmul.mubr.f32.gmra.mrb[0].mxu0 %v30
  %v135 = vpop.f32.mrb[0].mxu0
  %v136 = vadd.f32 %v67, %v135
  %v137 = vpop.f32.mrb[0].mxu0
  %138 = vmatprep.mubr.f32.mxu0 0.0
  %139 = vmatmul.mubr.f32.gmra.mrb[0].mxu0 %v31
  %v140 = vpop.f32.mrb[0].mxu0
  %v141 = vadd.f32 %v67, %v140
  %v142 = vpop.f32.mrb[0].mxu0
  %143 = vmatprep.mubr.f32.mxu0 0.0
  %144 = vmatmul.mubr.f32.gmra.mrb[0].mxu0 %v32
  %v145 = vpop.f32.mrb[0].mxu0
  %v146 = vadd.f32 %v67, %v145
  %v147 = vpop.f32.mrb[0].mxu0
  %148 = vmatprep.mubr.f32.mxu0 0.0
  %149 = vmatmul.mubr.f32.gmra.mrb[0].mxu0 %v33
  %v150 = vpop.f32.mrb[0].mxu0
  %v151 = vadd.f32 %v67, %v150
  %v152 = vpop.f32.mrb[0].mxu0
  %153 = vmatprep.mubr.f32.mxu0 0.0
  %154 = vmatmul.mubr.f32.gmra.mrb[0].mxu0 %v34
  %v155 = vpop.f32.mrb[0].mxu0
  %v156 = vadd.f32 %v67, %v155
  %v157 = vpop.f32.mrb[0].mxu0
  %158 = vmatprep.mubr.f32.mxu0 0.0
  %159 = vmatmul.mubr.f32.gmra.mrb[0].mxu0 %v35
  %v160 = vpop.f32.mrb[0].mxu0
  %v161 = vadd.f32 %v67, %v160
  %v162 = vpop.f32.mrb[0].mxu0
  %163 = vmatprep.mubr.f32.mxu0 0.0
  %164 = vmatmul.mubr.f32.gmra.mrb[0].mxu0 %v36
  %v165 = vpop.f32.mrb[0].mxu0
  %v166 = vadd.f32 %v67, %v165
  %v167 = vpop.f32.mrb[0].mxu0
  %168 = vmatprep.mubr.f32.mxu0 0.0
  %169 = vmatmul.mubr.f32.gmra.mrb[0].mxu0 %v37
  %v170 = vpop.f32.mrb[0].mxu0
  %v171 = vadd.f32 %v67, %v170
  %v172 = vpop.f32.mrb[0].mxu0
  %173 = vmatprep.mubr.f32.mxu0 0.0
  %174 = vmatmul.mubr.f32.gmra.mrb[0].mxu0 %v38
  %v175 = vpop.f32.mrb[0].mxu0
  %v176 = vadd.f32 %v67, %v175
  %v177 = vpop.f32.mrb[0].mxu0
  %178 = vmatprep.mubr.f32.mxu0 0.0
  %179 = vmatmul.mubr.f32.gmra.mrb[0].mxu0 %v39
  %v180 = vpop.f32.mrb[0].mxu0
  %v181 = vadd.f32 %v67, %v180
  %v182 = vpop.f32.mrb[0].mxu0
  %183 = vmatprep.mubr.f32.mxu0 0.0
  %184 = vmatmul.mubr.f32.gmra.mrb[0].mxu0 %v40
  %v185 = vpop.f32.mrb[0].mxu0
  %v186 = vadd.f32 %v67, %v185
  %v187 = vpop.f32.mrb[0].mxu0
  %188 = vmatprep.mubr.f32.mxu0 0.0
  %189 = vmatmul.mubr.f32.gmra.mrb[0].mxu0 %v41
  %v190 = vpop.f32.mrb[0].mxu0
  %v191 = vadd.f32 %v67, %v190
  %v192 = vpop.f32.mrb[0].mxu0
  %193 = vmatprep.mubr.f32.mxu0 0.0
  %194 = vmatmul.mubr.f32.gmra.mrb[0].mxu0 %v42
  %v195 = vpop.f32.mrb[0].mxu0
  %v196 = vadd.f32 %v67, %v195
  %v197 = vpop.f32.mrb[0].mxu0
  %198 = vmatprep.mubr.f32.mxu0 0.0
  %199 = vmatmul.mubr.f32.gmra.mrb[0].mxu0 %v43
  %v200 = vpop.f32.mrb[0].mxu0
  %v201 = vadd.f32 %v67, %v200
  %v202 = vpop.f32.mrb[0].mxu0
  %203 = vmatprep.mubr.f32.mxu0 0.0
  %204 = vmatmul.mubr.f32.gmra.mrb[0].mxu0 %v44
  %v205 = vpop.f32.mrb[0].mxu0
  %v206 = vadd.f32 %v67, %v205
  %v207 = vpop.f32.mrb[0].mxu0
  %208 = vmatprep.mubr.f32.mxu0 0.0
  %209 = vmatmul.mubr.f32.gmra.mrb[0].mxu0 %v45
  %v210 = vpop.f32.mrb[0].mxu0
  %v211 = vadd.f32 %v67, %v210
  %v212 = vpop.f32.mrb[0].mxu0
  %213 = vdwg.mxu0
  %214 = vst [vmem:[%s3] sm:$0xff] %v136
  %215 = vst [vmem:[%s3 + $0x8] sm:$0xff] %v141
  %216 = vst [vmem:[%s3 + $0x10] sm:$0xff] %v146
  %217 = vst [vmem:[%s3 + $0x18] sm:$0xff] %v151
  %218 = vst [vmem:[%s3 + $0x20] sm:$0xff] %v156
  %219 = vst [vmem:[%s3 + $0x28] sm:$0xff] %v161
  %220 = vst [vmem:[%s3 + $0x30] sm:$0xff] %v166
  %221 = vst [vmem:[%s3 + $0x38] sm:$0xff] %v171
  %222 = vst [vmem:[%s3 + $0x40] sm:$0xff] %v176
  %223 = vst [vmem:[%s3 + $0x48] sm:$0xff] %v181
  %224 = vst [vmem:[%s3 + $0x50] sm:$0xff] %v186
  %225 = vst [vmem:[%s3 + $0x58] sm:$0xff] %v191
  %226 = vst [vmem:[%s3 + $0x60] sm:$0xff] %v196
  %227 = vst [vmem:[%s3 + $0x68] sm:$0xff] %v201
  %228 = vst [vmem:[%s3 + $0x70] sm:$0xff] %v206
  %229 = vst [vmem:[%s3 + $0x78] sm:$0xff] %v211
  // Predicated region
  $region14: #{variational_gcn_encoder.3} parent=0 // pred_check
    _
  $region15: #{variational_gcn_encoder.3} parent=0 // pred_check_branch
    %231 = sbr.rel (0) target = $region17
  $region16: #{variational_gcn_encoder.3} parent=0 // pred_region
    _
  $region17: #{variational_gcn_encoder.3} parent=0 // pred_fallthru
    _
  // Predicated region
  $region18: #{variational_gcn_encoder.3} parent=0 // pred_check
    _
  $region19: #{variational_gcn_encoder.3} parent=0 // pred_check_branch
    %233 = sbr.rel (0) target = $region21
  $region20: #{variational_gcn_encoder.3} parent=0 // pred_region
    _
  $region21: #{variational_gcn_encoder.3} parent=0 // pred_fallthru
    _

// kernel: variational_gcn_encoder.2
$region0: #{variational_gcn_encoder.2}
  #allocation0 [shape = 'u32[]', space=smem, size = 0x4, offset = 0x4, fixed_abs, tag = 'smem constant byte address 0x4 - core index']
  #allocation1 [shape = 'u32[144,128]{1,0:T(1,128)}', space=vmem, size = 0x12000, scoped, tag = 'internal scratch']
  %s0 = inlined_call_operand.vmem [shape: bf16[128,128], index: 0, kind: input, shape index: {}]
  %s1 = inlined_call_operand.vmem [shape: bf16[128,16], index: 1, kind: input, shape index: {}]
  %s2 = inlined_call_operand.vmem [shape: f32[16,128], index: 2, kind: input, shape index: {}]
  %s3 = inlined_call_operand.vmem [shape: f32[1,128], index: 3, kind: input, shape index: {}]
  %s4 = inlined_call_operand.vmem [shape: f32[128,128], index: 4, kind: input, shape index: {}]
  %s5 = inlined_call_operand.vmem [shape: f32[128,128], index: 5, kind: output, shape index: {}]
  %s6 = sld [smem:[#allocation0]]
  $region30: #{variational_gcn_encoder.2} parent=0
    _
  %s8 = ssub.s32 1, %s6
  %s9 = scalar_select 0, %s8, %s6
  // Predicated region
  $region2: #{variational_gcn_encoder.2} parent=0 // pred_check
    _
  $region3: #{variational_gcn_encoder.2} parent=0 // pred_check_branch
    %11 = sbr.rel (0) target = $region5
  $region4: #{variational_gcn_encoder.2} parent=0 // pred_region
    _
  $region5: #{variational_gcn_encoder.2} parent=0 // pred_fallthru
    _
  // Predicated region
  $region6: #{variational_gcn_encoder.2} parent=0 // pred_check
    _
  $region7: #{variational_gcn_encoder.2} parent=0 // pred_check_branch
    %13 = sbr.rel (0) target = $region9
  $region8: #{variational_gcn_encoder.2} parent=0 // pred_region
    _
  $region9: #{variational_gcn_encoder.2} parent=0 // pred_fallthru
    _
  // Predicated region
  $region10: #{variational_gcn_encoder.2} parent=0 // pred_check
    _
  $region11: #{variational_gcn_encoder.2} parent=0 // pred_check_branch
    %15 = sbr.rel (0) target = $region13
  $region12: #{variational_gcn_encoder.2} parent=0 // pred_region
    _
  $region13: #{variational_gcn_encoder.2} parent=0 // pred_fallthru
    _
  // Predicated region
  $region14: #{variational_gcn_encoder.2} parent=0 // pred_check
    _
  $region15: #{variational_gcn_encoder.2} parent=0 // pred_check_branch
    %17 = sbr.rel (0) target = $region17
  $region16: #{variational_gcn_encoder.2} parent=0 // pred_region
    _
  $region17: #{variational_gcn_encoder.2} parent=0 // pred_fallthru
    _
  // Predicated region
  $region18: #{variational_gcn_encoder.2} parent=0 // pred_check
    _
  $region19: #{variational_gcn_encoder.2} parent=0 // pred_check_branch
    %19 = sbr.rel (0) target = $region21
  $region20: #{variational_gcn_encoder.2} parent=0 // pred_region
    _
  $region21: #{variational_gcn_encoder.2} parent=0 // pred_fallthru
    _
  %v21 = vld [vmem:[%s0] sm:$0xf]
  %v22 = vld [vmem:[%s0 + $0x4] sm:$0xf]
  %v23 = vld [vmem:[%s0 + $0x8] sm:$0xf]
  %v24 = vld [vmem:[%s0 + $0xc] sm:$0xf]
  %v25 = vld [vmem:[%s0 + $0x10] sm:$0xf]
  %v26 = vld [vmem:[%s0 + $0x14] sm:$0xf]
  %v27 = vld [vmem:[%s0 + $0x18] sm:$0xf]
  %v28 = vld [vmem:[%s0 + $0x1c] sm:$0xf]
  %v29 = vld [vmem:[%s0 + $0x20] sm:$0xf]
  %v30 = vld [vmem:[%s0 + $0x24] sm:$0xf]
  %v31 = vld [vmem:[%s0 + $0x28] sm:$0xf]
  %v32 = vld [vmem:[%s0 + $0x2c] sm:$0xf]
  %v33 = vld [vmem:[%s0 + $0x30] sm:$0xf]
  %v34 = vld [vmem:[%s0 + $0x34] sm:$0xf]
  %v35 = vld [vmem:[%s0 + $0x38] sm:$0xf]
  %v36 = vld [vmem:[%s0 + $0x3c] sm:$0xf]
  %v37 = vld [vmem:[%s1] sm:$0xf]
  %v38 = vld [vmem:[%s1 + $0x4] sm:$0xf]
  %v39 = vld [vmem:[%s1 + $0x8] sm:$0xf]
  %v40 = vld [vmem:[%s1 + $0xc] sm:$0xf]
  %v41 = vld [vmem:[%s1 + $0x10] sm:$0xf]
  %v42 = vld [vmem:[%s1 + $0x14] sm:$0xf]
  %v43 = vld [vmem:[%s1 + $0x18] sm:$0xf]
  %v44 = vld [vmem:[%s1 + $0x1c] sm:$0xf]
  %v45 = vld [vmem:[%s1 + $0x20] sm:$0xf]
  %v46 = vld [vmem:[%s1 + $0x24] sm:$0xf]
  %v47 = vld [vmem:[%s1 + $0x28] sm:$0xf]
  %v48 = vld [vmem:[%s1 + $0x2c] sm:$0xf]
  %v49 = vld [vmem:[%s1 + $0x30] sm:$0xf]
  %v50 = vld [vmem:[%s1 + $0x34] sm:$0xf]
  %v51 = vld [vmem:[%s1 + $0x38] sm:$0xf]
  %v52 = vld [vmem:[%s1 + $0x3c] sm:$0xf]
  %v69 = vunpack.c.l.b16 %v21
  %v70 = vunpack.c.l.b16 %v22
  %v71 = vunpack.c.l.b16 %v23
  %v72 = vunpack.c.l.b16 %v24
  %v73 = vunpack.c.l.b16 %v25
  %v74 = vunpack.c.l.b16 %v26
  %v75 = vunpack.c.l.b16 %v27
  %v76 = vunpack.c.l.b16 %v28
  %v77 = vunpack.c.l.b16 %v29
  %v78 = vunpack.c.l.b16 %v30
  %v79 = vunpack.c.l.b16 %v31
  %v80 = vunpack.c.l.b16 %v32
  %v81 = vunpack.c.l.b16 %v33
  %v82 = vunpack.c.l.b16 %v34
  %v83 = vunpack.c.l.b16 %v35
  %v84 = vunpack.c.l.b16 %v36
  %v85 = vpack.c.b16 %v70, %v69
  %v86 = vpack.c.b16 %v72, %v71
  %v87 = vpack.c.b16 %v74, %v73
  %v88 = vpack.c.b16 %v76, %v75
  %v89 = vpack.c.b16 %v78, %v77
  %v90 = vpack.c.b16 %v80, %v79
  %v91 = vpack.c.b16 %v82, %v81
  %v92 = vpack.c.b16 %v84, %v83
  %v117 = vunpack.c.l.b16 %v37
  %v118 = vunpack.c.l.b16 %v38
  %v119 = vunpack.c.l.b16 %v39
  %v120 = vunpack.c.l.b16 %v40
  %v121 = vunpack.c.l.b16 %v41
  %v122 = vunpack.c.l.b16 %v42
  %v123 = vunpack.c.l.b16 %v43
  %v124 = vunpack.c.l.b16 %v44
  %v125 = vunpack.c.l.b16 %v45
  %v126 = vunpack.c.l.b16 %v46
  %v127 = vunpack.c.l.b16 %v47
  %v128 = vunpack.c.l.b16 %v48
  %v129 = vunpack.c.l.b16 %v49
  %v130 = vunpack.c.l.b16 %v50
  %v131 = vunpack.c.l.b16 %v51
  %v132 = vunpack.c.l.b16 %v52
  %v133 = vpack.c.b16 %v118, %v117
  %v134 = vpack.c.b16 %v120, %v119
  %v135 = vpack.c.b16 %v122, %v121
  %v136 = vpack.c.b16 %v124, %v123
  %v137 = vpack.c.b16 %v126, %v125
  %v138 = vpack.c.b16 %v128, %v127
  %v139 = vpack.c.b16 %v130, %v129
  %v140 = vpack.c.b16 %v132, %v131
  %149 = vmatprep.subr.bf16.mxu0 0
  %150 = vmatpush1.bf16.msra.mxu0 %v133
  %151 = vmatprep.subr.bf16.mxu0 0
  %152 = vmatpush1.bf16.msra.mxu0 %v134
  %153 = vmatprep.subr.bf16.mxu0 0
  %154 = vmatpush1.bf16.msra.mxu0 %v135
  %155 = vmatprep.subr.bf16.mxu0 0
  %156 = vmatpush1.bf16.msra.mxu0 %v136
  %157 = vmatprep.subr.bf16.mxu0 0
  %158 = vmatpush1.bf16.msra.mxu0 %v137
  %159 = vmatprep.subr.bf16.mxu0 0
  %160 = vmatpush1.bf16.msra.mxu0 %v138
  %161 = vmatprep.subr.bf16.mxu0 0
  %162 = vmatpush1.bf16.msra.mxu0 %v139
  %163 = vmatprep.subr.bf16.mxu0 0
  %164 = vmatpush1.bf16.msra.mxu0 %v140
  %165 = vmatprep.subr.bf16.mxu0 0
  %166 = vmatpush1.bf16.msra.mxu0 0
  %167 = vmatprep.subr.bf16.mxu0 0
  %168 = vmatpush1.bf16.msra.mxu0 0
  %169 = vmatprep.subr.bf16.mxu0 0
  %170 = vmatpush1.bf16.msra.mxu0 0
  %171 = vmatprep.subr.bf16.mxu0 0
  %172 = vmatpush1.bf16.msra.mxu0 0
  %173 = vmatprep.subr.bf16.mxu0 0
  %174 = vmatpush1.bf16.msra.mxu0 0
  %175 = vmatprep.subr.bf16.mxu0 0
  %176 = vmatpush1.bf16.msra.mxu0 0
  %177 = vmatprep.subr.bf16.mxu0 0
  %178 = vmatpush1.bf16.msra.mxu0 0
  %179 = vmatprep.subr.bf16.mxu0 0
  %180 = vmatpush1.bf16.msra.mxu0 0
  %181 = vmatprep.mubr.bf16.mxu0 0
  %182 = vmatmul.mubr.bf16.gmra.mrb[0].mxu0 %v85
  %v183 = vpop.f32.mrb[0].mxu0
  %v184 = vadd.f32 0.0, %v183
  %v185 = vpop.f32.mrb[0].mxu0
  %v186 = vpop.f32.mrb[0].mxu0
  %v187 = vadd.f32 0.0, %v186
  %v188 = vpop.f32.mrb[0].mxu0
  %189 = vmatprep.mubr.bf16.mxu0 0
  %190 = vmatmul.mubr.bf16.gmra.mrb[0].mxu0 %v86
  %v191 = vpop.f32.mrb[0].mxu0
  %v192 = vadd.f32 0.0, %v191
  %v193 = vpop.f32.mrb[0].mxu0
  %v194 = vpop.f32.mrb[0].mxu0
  %v195 = vadd.f32 0.0, %v194
  %v196 = vpop.f32.mrb[0].mxu0
  %197 = vmatprep.mubr.bf16.mxu0 0
  %198 = vmatmul.mubr.bf16.gmra.mrb[0].mxu0 %v87
  %v199 = vpop.f32.mrb[0].mxu0
  %v200 = vadd.f32 0.0, %v199
  %v201 = vpop.f32.mrb[0].mxu0
  %v202 = vpop.f32.mrb[0].mxu0
  %v203 = vadd.f32 0.0, %v202
  %v204 = vpop.f32.mrb[0].mxu0
  %205 = vmatprep.mubr.bf16.mxu0 0
  %206 = vmatmul.mubr.bf16.gmra.mrb[0].mxu0 %v88
  %v207 = vpop.f32.mrb[0].mxu0
  %v208 = vadd.f32 0.0, %v207
  %v209 = vpop.f32.mrb[0].mxu0
  %v210 = vpop.f32.mrb[0].mxu0
  %v211 = vadd.f32 0.0, %v210
  %v212 = vpop.f32.mrb[0].mxu0
  %213 = vmatprep.mubr.bf16.mxu0 0
  %214 = vmatmul.mubr.bf16.gmra.mrb[0].mxu0 %v89
  %v215 = vpop.f32.mrb[0].mxu0
  %v216 = vadd.f32 0.0, %v215
  %v217 = vpop.f32.mrb[0].mxu0
  %v218 = vpop.f32.mrb[0].mxu0
  %v219 = vadd.f32 0.0, %v218
  %v220 = vpop.f32.mrb[0].mxu0
  %221 = vmatprep.mubr.bf16.mxu0 0
  %222 = vmatmul.mubr.bf16.gmra.mrb[0].mxu0 %v90
  %v223 = vpop.f32.mrb[0].mxu0
  %v224 = vadd.f32 0.0, %v223
  %v225 = vpop.f32.mrb[0].mxu0
  %v226 = vpop.f32.mrb[0].mxu0
  %v227 = vadd.f32 0.0, %v226
  %v228 = vpop.f32.mrb[0].mxu0
  %229 = vmatprep.mubr.bf16.mxu0 0
  %230 = vmatmul.mubr.bf16.gmra.mrb[0].mxu0 %v91
  %v231 = vpop.f32.mrb[0].mxu0
  %v232 = vadd.f32 0.0, %v231
  %v233 = vpop.f32.mrb[0].mxu0
  %v234 = vpop.f32.mrb[0].mxu0
  %v235 = vadd.f32 0.0, %v234
  %v236 = vpop.f32.mrb[0].mxu0
  %237 = vmatprep.mubr.bf16.mxu0 0
  %238 = vmatmul.mubr.bf16.gmra.mrb[0].mxu0 %v92
  %v239 = vpop.f32.mrb[0].mxu0
  %v240 = vadd.f32 0.0, %v239
  %v241 = vpop.f32.mrb[0].mxu0
  %v242 = vpop.f32.mrb[0].mxu0
  %v243 = vadd.f32 0.0, %v242
  %v244 = vpop.f32.mrb[0].mxu0
  %245 = vdwg.mxu0
  %v246 = vld [vmem:[%s2] sm:$0xff]
  %v247 = vld [vmem:[%s2 + $0x8] sm:$0xff]
  %v248 = vld [vmem:[%s3] sm:$0x1]
  %v250 = vlaneseq
  %v251 = vshrl.u32 %v250, 7
  %v252 = vsub.s32 0, %v251
  %v253 = vrot.slane %v248, %v252
  %vm255 = vcmask 130048
  %v257 = vsel %vm255, %v184, 0
  %v260 = vsel %vm255, %v187, 0
  %v263 = vsel %vm255, %v192, 0
  %v266 = vsel %vm255, %v195, 0
  %v269 = vsel %vm255, %v200, 0
  %v272 = vsel %vm255, %v203, 0
  %v275 = vsel %vm255, %v208, 0
  %v278 = vsel %vm255, %v211, 0
  %v281 = vsel %vm255, %v216, 0
  %v284 = vsel %vm255, %v219, 0
  %v287 = vsel %vm255, %v224, 0
  %v290 = vsel %vm255, %v227, 0
  %v293 = vsel %vm255, %v232, 0
  %v296 = vsel %vm255, %v235, 0
  %v299 = vsel %vm255, %v240, 0
  %v302 = vsel %vm255, %v243, 0
  %304 = vmatprep.subr.mxu0 0.0
  %305 = vmatpush1.msra.mxu0 %v246
  %306 = vmatprep.subr.mxu0 0.0
  %307 = vmatpush1.msra.mxu0 %v247
  %308 = vmatprep.subr.mxu0 0.0
  %309 = vmatpush1.msra.mxu0 0.0
  %310 = vmatprep.subr.mxu0 0.0
  %311 = vmatpush1.msra.mxu0 0.0
  %312 = vmatprep.subr.mxu0 0.0
  %313 = vmatpush1.msra.mxu0 0.0
  %314 = vmatprep.subr.mxu0 0.0
  %315 = vmatpush1.msra.mxu0 0.0
  %316 = vmatprep.subr.mxu0 0.0
  %317 = vmatpush1.msra.mxu0 0.0
  %318 = vmatprep.subr.mxu0 0.0
  %319 = vmatpush1.msra.mxu0 0.0
  %320 = vmatprep.subr.mxu0 0.0
  %321 = vmatpush1.msra.mxu0 0.0
  %322 = vmatprep.subr.mxu0 0.0
  %323 = vmatpush1.msra.mxu0 0.0
  %324 = vmatprep.subr.mxu0 0.0
  %325 = vmatpush1.msra.mxu0 0.0
  %326 = vmatprep.subr.mxu0 0.0
  %327 = vmatpush1.msra.mxu0 0.0
  %328 = vmatprep.subr.mxu0 0.0
  %329 = vmatpush1.msra.mxu0 0.0
  %330 = vmatprep.subr.mxu0 0.0
  %331 = vmatpush1.msra.mxu0 0.0
  %332 = vmatprep.subr.mxu0 0.0
  %333 = vmatpush1.msra.mxu0 0.0
  %334 = vmatprep.subr.mxu0 0.0
  %335 = vmatpush1.msra.mxu0 0.0
  %336 = vmatprep.subr.mxu0 0.0
  %337 = vmatpush1.msra.mxu0 0.0
  %338 = vmatprep.subr.mxu0 0.0
  %339 = vmatpush1.msra.mxu0 0.0
  %340 = vmatprep.subr.mxu0 0.0
  %341 = vmatpush1.msra.mxu0 0.0
  %342 = vmatprep.subr.mxu0 0.0
  %343 = vmatpush1.msra.mxu0 0.0
  %344 = vmatprep.subr.mxu0 0.0
  %345 = vmatpush1.msra.mxu0 0.0
  %346 = vmatprep.subr.mxu0 0.0
  %347 = vmatpush1.msra.mxu0 0.0
  %348 = vmatprep.subr.mxu0 0.0
  %349 = vmatpush1.msra.mxu0 0.0
  %350 = vmatprep.subr.mxu0 0.0
  %351 = vmatpush1.msra.mxu0 0.0
  %352 = vmatprep.subr.mxu0 0.0
  %353 = vmatpush1.msra.mxu0 0.0
  %354 = vmatprep.subr.mxu0 0.0
  %355 = vmatpush1.msra.mxu0 0.0
  %356 = vmatprep.subr.mxu0 0.0
  %357 = vmatpush1.msra.mxu0 0.0
  %358 = vmatprep.subr.mxu0 0.0
  %359 = vmatpush1.msra.mxu0 0.0
  %360 = vmatprep.subr.mxu0 0.0
  %361 = vmatpush1.msra.mxu0 0.0
  %362 = vmatprep.subr.mxu0 0.0
  %363 = vmatpush1.msra.mxu0 0.0
  %364 = vmatprep.subr.mxu0 0.0
  %365 = vmatpush1.msra.mxu0 0.0
  %366 = vmatprep.subr.mxu0 0.0
  %367 = vmatpush1.msra.mxu0 0.0
  %368 = vmatprep.mubr.f32.mxu0 0.0
  %369 = vmatmul.mubr.f32.gmra.mrb[0].mxu0 %v257
  %v370 = vpop.f32.mrb[0].mxu0
  %v371 = vadd.f32 %v253, %v370
  %v372 = vpop.f32.mrb[0].mxu0
  %373 = vmatprep.mubr.f32.mxu0 0.0
  %374 = vmatmul.mubr.f32.gmra.mrb[0].mxu0 %v260
  %v375 = vpop.f32.mrb[0].mxu0
  %v376 = vadd.f32 %v253, %v375
  %v377 = vpop.f32.mrb[0].mxu0
  %378 = vmatprep.mubr.f32.mxu0 0.0
  %379 = vmatmul.mubr.f32.gmra.mrb[0].mxu0 %v263
  %v380 = vpop.f32.mrb[0].mxu0
  %v381 = vadd.f32 %v253, %v380
  %v382 = vpop.f32.mrb[0].mxu0
  %383 = vmatprep.mubr.f32.mxu0 0.0
  %384 = vmatmul.mubr.f32.gmra.mrb[0].mxu0 %v266
  %v385 = vpop.f32.mrb[0].mxu0
  %v386 = vadd.f32 %v253, %v385
  %v387 = vpop.f32.mrb[0].mxu0
  %388 = vmatprep.mubr.f32.mxu0 0.0
  %389 = vmatmul.mubr.f32.gmra.mrb[0].mxu0 %v269
  %v390 = vpop.f32.mrb[0].mxu0
  %v391 = vadd.f32 %v253, %v390
  %v392 = vpop.f32.mrb[0].mxu0
  %393 = vmatprep.mubr.f32.mxu0 0.0
  %394 = vmatmul.mubr.f32.gmra.mrb[0].mxu0 %v272
  %v395 = vpop.f32.mrb[0].mxu0
  %v396 = vadd.f32 %v253, %v395
  %v397 = vpop.f32.mrb[0].mxu0
  %398 = vmatprep.mubr.f32.mxu0 0.0
  %399 = vmatmul.mubr.f32.gmra.mrb[0].mxu0 %v275
  %v400 = vpop.f32.mrb[0].mxu0
  %v401 = vadd.f32 %v253, %v400
  %v402 = vpop.f32.mrb[0].mxu0
  %403 = vmatprep.mubr.f32.mxu0 0.0
  %404 = vmatmul.mubr.f32.gmra.mrb[0].mxu0 %v278
  %v405 = vpop.f32.mrb[0].mxu0
  %v406 = vadd.f32 %v253, %v405
  %v407 = vpop.f32.mrb[0].mxu0
  %408 = vmatprep.mubr.f32.mxu0 0.0
  %409 = vmatmul.mubr.f32.gmra.mrb[0].mxu0 %v281
  %v410 = vpop.f32.mrb[0].mxu0
  %v411 = vadd.f32 %v253, %v410
  %v412 = vpop.f32.mrb[0].mxu0
  %413 = vmatprep.mubr.f32.mxu0 0.0
  %414 = vmatmul.mubr.f32.gmra.mrb[0].mxu0 %v284
  %v415 = vpop.f32.mrb[0].mxu0
  %v416 = vadd.f32 %v253, %v415
  %v417 = vpop.f32.mrb[0].mxu0
  %418 = vmatprep.mubr.f32.mxu0 0.0
  %419 = vmatmul.mubr.f32.gmra.mrb[0].mxu0 %v287
  %v420 = vpop.f32.mrb[0].mxu0
  %v421 = vadd.f32 %v253, %v420
  %v422 = vpop.f32.mrb[0].mxu0
  %423 = vmatprep.mubr.f32.mxu0 0.0
  %424 = vmatmul.mubr.f32.gmra.mrb[0].mxu0 %v290
  %v425 = vpop.f32.mrb[0].mxu0
  %v426 = vadd.f32 %v253, %v425
  %v427 = vpop.f32.mrb[0].mxu0
  %428 = vmatprep.mubr.f32.mxu0 0.0
  %429 = vmatmul.mubr.f32.gmra.mrb[0].mxu0 %v293
  %v430 = vpop.f32.mrb[0].mxu0
  %v431 = vadd.f32 %v253, %v430
  %v432 = vpop.f32.mrb[0].mxu0
  %433 = vmatprep.mubr.f32.mxu0 0.0
  %434 = vmatmul.mubr.f32.gmra.mrb[0].mxu0 %v296
  %v435 = vpop.f32.mrb[0].mxu0
  %v436 = vadd.f32 %v253, %v435
  %v437 = vpop.f32.mrb[0].mxu0
  %438 = vmatprep.mubr.f32.mxu0 0.0
  %439 = vmatmul.mubr.f32.gmra.mrb[0].mxu0 %v299
  %v440 = vpop.f32.mrb[0].mxu0
  %v441 = vadd.f32 %v253, %v440
  %v442 = vpop.f32.mrb[0].mxu0
  %443 = vmatprep.mubr.f32.mxu0 0.0
  %444 = vmatmul.mubr.f32.gmra.mrb[0].mxu0 %v302
  %v445 = vpop.f32.mrb[0].mxu0
  %v446 = vadd.f32 %v253, %v445
  %v447 = vpop.f32.mrb[0].mxu0
  %448 = vdwg.mxu0
  %v449 = vmax.f32 %v371, 0.0
  %v450 = vmax.f32 %v376, 0.0
  %v451 = vmax.f32 %v381, 0.0
  %v452 = vmax.f32 %v386, 0.0
  %v453 = vmax.f32 %v391, 0.0
  %v454 = vmax.f32 %v396, 0.0
  %v455 = vmax.f32 %v401, 0.0
  %v456 = vmax.f32 %v406, 0.0
  %v457 = vmax.f32 %v411, 0.0
  %v458 = vmax.f32 %v416, 0.0
  %v459 = vmax.f32 %v421, 0.0
  %v460 = vmax.f32 %v426, 0.0
  %v461 = vmax.f32 %v431, 0.0
  %v462 = vmax.f32 %v436, 0.0
  %v463 = vmax.f32 %v441, 0.0
  %v464 = vmax.f32 %v446, 0.0
  %v465 = vld [vmem:[%s4] sm:$0xff]
  %v466 = vld [vmem:[%s4 + $0x8] sm:$0xff]
  %v467 = vld [vmem:[%s4 + $0x10] sm:$0xff]
  %v468 = vld [vmem:[%s4 + $0x18] sm:$0xff]
  %v469 = vld [vmem:[%s4 + $0x20] sm:$0xff]
  %v470 = vld [vmem:[%s4 + $0x28] sm:$0xff]
  %v471 = vld [vmem:[%s4 + $0x30] sm:$0xff]
  %v472 = vld [vmem:[%s4 + $0x38] sm:$0xff]
  %v473 = vld [vmem:[%s4 + $0x40] sm:$0xff]
  %v474 = vld [vmem:[%s4 + $0x48] sm:$0xff]
  %v475 = vld [vmem:[%s4 + $0x50] sm:$0xff]
  %v476 = vld [vmem:[%s4 + $0x58] sm:$0xff]
  %v477 = vld [vmem:[%s4 + $0x60] sm:$0xff]
  %v478 = vld [vmem:[%s4 + $0x68] sm:$0xff]
  %v479 = vld [vmem:[%s4 + $0x70] sm:$0xff]
  %v480 = vld [vmem:[%s4 + $0x78] sm:$0xff]
  %481 = vmatprep.subr.mxu0 0.0
  %482 = vmatpush1.msra.mxu0 %v465
  %483 = vmatprep.subr.mxu0 0.0
  %484 = vmatpush1.msra.mxu0 %v466
  %485 = vmatprep.subr.mxu0 0.0
  %486 = vmatpush1.msra.mxu0 %v467
  %487 = vmatprep.subr.mxu0 0.0
  %488 = vmatpush1.msra.mxu0 %v468
  %489 = vmatprep.subr.mxu0 0.0
  %490 = vmatpush1.msra.mxu0 %v469
  %491 = vmatprep.subr.mxu0 0.0
  %492 = vmatpush1.msra.mxu0 %v470
  %493 = vmatprep.subr.mxu0 0.0
  %494 = vmatpush1.msra.mxu0 %v471
  %495 = vmatprep.subr.mxu0 0.0
  %496 = vmatpush1.msra.mxu0 %v472
  %497 = vmatprep.subr.mxu0 0.0
  %498 = vmatpush1.msra.mxu0 %v473
  %499 = vmatprep.subr.mxu0 0.0
  %500 = vmatpush1.msra.mxu0 %v474
  %501 = vmatprep.subr.mxu0 0.0
  %502 = vmatpush1.msra.mxu0 %v475
  %503 = vmatprep.subr.mxu0 0.0
  %504 = vmatpush1.msra.mxu0 %v476
  %505 = vmatprep.subr.mxu0 0.0
  %506 = vmatpush1.msra.mxu0 %v477
  %507 = vmatprep.subr.mxu0 0.0
  %508 = vmatpush1.msra.mxu0 %v478
  %509 = vmatprep.subr.mxu0 0.0
  %510 = vmatpush1.msra.mxu0 %v479
  %511 = vmatprep.subr.mxu0 0.0
  %512 = vmatpush1.msra.mxu0 %v480
  %513 = vmatprep.subr.mxu0 0.0
  %514 = vmatpush1.msra.mxu0 0.0
  %515 = vmatprep.subr.mxu0 0.0
  %516 = vmatpush1.msra.mxu0 0.0
  %517 = vmatprep.subr.mxu0 0.0
  %518 = vmatpush1.msra.mxu0 0.0
  %519 = vmatprep.subr.mxu0 0.0
  %520 = vmatpush1.msra.mxu0 0.0
  %521 = vmatprep.subr.mxu0 0.0
  %522 = vmatpush1.msra.mxu0 0.0
  %523 = vmatprep.subr.mxu0 0.0
  %524 = vmatpush1.msra.mxu0 0.0
  %525 = vmatprep.subr.mxu0 0.0
  %526 = vmatpush1.msra.mxu0 0.0
  %527 = vmatprep.subr.mxu0 0.0
  %528 = vmatpush1.msra.mxu0 0.0
  %529 = vmatprep.subr.mxu0 0.0
  %530 = vmatpush1.msra.mxu0 0.0
  %531 = vmatprep.subr.mxu0 0.0
  %532 = vmatpush1.msra.mxu0 0.0
  %533 = vmatprep.subr.mxu0 0.0
  %534 = vmatpush1.msra.mxu0 0.0
  %535 = vmatprep.subr.mxu0 0.0
  %536 = vmatpush1.msra.mxu0 0.0
  %537 = vmatprep.subr.mxu0 0.0
  %538 = vmatpush1.msra.mxu0 0.0
  %539 = vmatprep.subr.mxu0 0.0
  %540 = vmatpush1.msra.mxu0 0.0
  %541 = vmatprep.subr.mxu0 0.0
  %542 = vmatpush1.msra.mxu0 0.0
  %543 = vmatprep.subr.mxu0 0.0
  %544 = vmatpush1.msra.mxu0 0.0
  %545 = vmatprep.mubr.f32.mxu0 0.0
  %546 = vmatmul.mubr.f32.gmra.mrb[0].mxu0 %v449
  %v547 = vpop.f32.mrb[0].mxu0
  %v548 = vadd.f32 0.0, %v547
  %v549 = vpop.f32.mrb[0].mxu0
  %550 = vmatprep.mubr.f32.mxu0 0.0
  %551 = vmatmul.mubr.f32.gmra.mrb[0].mxu0 %v450
  %v552 = vpop.f32.mrb[0].mxu0
  %v553 = vadd.f32 0.0, %v552
  %v554 = vpop.f32.mrb[0].mxu0
  %555 = vmatprep.mubr.f32.mxu0 0.0
  %556 = vmatmul.mubr.f32.gmra.mrb[0].mxu0 %v451
  %v557 = vpop.f32.mrb[0].mxu0
  %v558 = vadd.f32 0.0, %v557
  %v559 = vpop.f32.mrb[0].mxu0
  %560 = vmatprep.mubr.f32.mxu0 0.0
  %561 = vmatmul.mubr.f32.gmra.mrb[0].mxu0 %v452
  %v562 = vpop.f32.mrb[0].mxu0
  %v563 = vadd.f32 0.0, %v562
  %v564 = vpop.f32.mrb[0].mxu0
  %565 = vmatprep.mubr.f32.mxu0 0.0
  %566 = vmatmul.mubr.f32.gmra.mrb[0].mxu0 %v453
  %v567 = vpop.f32.mrb[0].mxu0
  %v568 = vadd.f32 0.0, %v567
  %v569 = vpop.f32.mrb[0].mxu0
  %570 = vmatprep.mubr.f32.mxu0 0.0
  %571 = vmatmul.mubr.f32.gmra.mrb[0].mxu0 %v454
  %v572 = vpop.f32.mrb[0].mxu0
  %v573 = vadd.f32 0.0, %v572
  %v574 = vpop.f32.mrb[0].mxu0
  %575 = vmatprep.mubr.f32.mxu0 0.0
  %576 = vmatmul.mubr.f32.gmra.mrb[0].mxu0 %v455
  %v577 = vpop.f32.mrb[0].mxu0
  %v578 = vadd.f32 0.0, %v577
  %v579 = vpop.f32.mrb[0].mxu0
  %580 = vmatprep.mubr.f32.mxu0 0.0
  %581 = vmatmul.mubr.f32.gmra.mrb[0].mxu0 %v456
  %v582 = vpop.f32.mrb[0].mxu0
  %v583 = vadd.f32 0.0, %v582
  %v584 = vpop.f32.mrb[0].mxu0
  %585 = vmatprep.mubr.f32.mxu0 0.0
  %586 = vmatmul.mubr.f32.gmra.mrb[0].mxu0 %v457
  %v587 = vpop.f32.mrb[0].mxu0
  %v588 = vadd.f32 0.0, %v587
  %v589 = vpop.f32.mrb[0].mxu0
  %590 = vmatprep.mubr.f32.mxu0 0.0
  %591 = vmatmul.mubr.f32.gmra.mrb[0].mxu0 %v458
  %v592 = vpop.f32.mrb[0].mxu0
  %v593 = vadd.f32 0.0, %v592
  %v594 = vpop.f32.mrb[0].mxu0
  %595 = vmatprep.mubr.f32.mxu0 0.0
  %596 = vmatmul.mubr.f32.gmra.mrb[0].mxu0 %v459
  %v597 = vpop.f32.mrb[0].mxu0
  %v598 = vadd.f32 0.0, %v597
  %v599 = vpop.f32.mrb[0].mxu0
  %600 = vmatprep.mubr.f32.mxu0 0.0
  %601 = vmatmul.mubr.f32.gmra.mrb[0].mxu0 %v460
  %v602 = vpop.f32.mrb[0].mxu0
  %v603 = vadd.f32 0.0, %v602
  %v604 = vpop.f32.mrb[0].mxu0
  %605 = vmatprep.mubr.f32.mxu0 0.0
  %606 = vmatmul.mubr.f32.gmra.mrb[0].mxu0 %v461
  %v607 = vpop.f32.mrb[0].mxu0
  %v608 = vadd.f32 0.0, %v607
  %v609 = vpop.f32.mrb[0].mxu0
  %610 = vmatprep.mubr.f32.mxu0 0.0
  %611 = vmatmul.mubr.f32.gmra.mrb[0].mxu0 %v462
  %v612 = vpop.f32.mrb[0].mxu0
  %v613 = vadd.f32 0.0, %v612
  %v614 = vpop.f32.mrb[0].mxu0
  %615 = vmatprep.mubr.f32.mxu0 0.0
  %616 = vmatmul.mubr.f32.gmra.mrb[0].mxu0 %v463
  %v617 = vpop.f32.mrb[0].mxu0
  %v618 = vadd.f32 0.0, %v617
  %v619 = vpop.f32.mrb[0].mxu0
  %620 = vmatprep.mubr.f32.mxu0 0.0
  %621 = vmatmul.mubr.f32.gmra.mrb[0].mxu0 %v464
  %v622 = vpop.f32.mrb[0].mxu0
  %v623 = vadd.f32 0.0, %v622
  %v624 = vpop.f32.mrb[0].mxu0
  %625 = vdwg.mxu0
  %626 = vst [vmem:[%s5] sm:$0xff] %v548
  %627 = vst [vmem:[%s5 + $0x8] sm:$0xff] %v553
  %628 = vst [vmem:[%s5 + $0x10] sm:$0xff] %v558
  %629 = vst [vmem:[%s5 + $0x18] sm:$0xff] %v563
  %630 = vst [vmem:[%s5 + $0x20] sm:$0xff] %v568
  %631 = vst [vmem:[%s5 + $0x28] sm:$0xff] %v573
  %632 = vst [vmem:[%s5 + $0x30] sm:$0xff] %v578
  %633 = vst [vmem:[%s5 + $0x38] sm:$0xff] %v583
  %634 = vst [vmem:[%s5 + $0x40] sm:$0xff] %v588
  %635 = vst [vmem:[%s5 + $0x48] sm:$0xff] %v593
  %636 = vst [vmem:[%s5 + $0x50] sm:$0xff] %v598
  %637 = vst [vmem:[%s5 + $0x58] sm:$0xff] %v603
  %638 = vst [vmem:[%s5 + $0x60] sm:$0xff] %v608
  %639 = vst [vmem:[%s5 + $0x68] sm:$0xff] %v613
  %640 = vst [vmem:[%s5 + $0x70] sm:$0xff] %v618
  %641 = vst [vmem:[%s5 + $0x78] sm:$0xff] %v623
  // Predicated region
  $region22: #{variational_gcn_encoder.2} parent=0 // pred_check
    _
  $region23: #{variational_gcn_encoder.2} parent=0 // pred_check_branch
    %643 = sbr.rel (0) target = $region25
  $region24: #{variational_gcn_encoder.2} parent=0 // pred_region
    _
  $region25: #{variational_gcn_encoder.2} parent=0 // pred_fallthru
    _
  // Predicated region
  $region26: #{variational_gcn_encoder.2} parent=0 // pred_check
    _
  $region27: #{variational_gcn_encoder.2} parent=0 // pred_check_branch
    %645 = sbr.rel (0) target = $region29
  $region28: #{variational_gcn_encoder.2} parent=0 // pred_region
    _
  $region29: #{variational_gcn_encoder.2} parent=0 // pred_fallthru
    _

</llo_original>
